<compile_context>
chip_gen: v7x
topology: tpu7x:2x2x1
jax: 0.10.0
libtpu: 0.0.40
codegen_flags: <defaults>
</compile_context>

<pallas_src>
import functools

import jax
import jax.numpy as jnp
from jax import lax
from jax.experimental import pallas as pl
from jax.experimental.pallas import tpu as pltpu

_LANE = 128
_MAX_COLS = 512 * _LANE          # 64K lanes/row -> one packed-row strip is 2 MiB


def _identity(x):
    return x


# The `_forward` of the Noise base class (identity).
# TODO(synk): subclasses of Noise override _forward (e.g. jitter/dropout);
#             rebind `_forward_compute` to their elementwise transform here.
_forward_compute = _identity


def _noise_kernel(x_ref, o_ref):
    # Pure elementwise `_forward` on one lane-dense (tile_rows, tile_cols) block.
    o_ref[...] = _forward_compute(x_ref[...])


def _sublane_pack(dtype):
    # Packed sublane count: f32 -> 8, bf16 -> 16, int8/fp8 -> 32.
    return max(8, 32 // jnp.dtype(dtype).itemsize)


def _per_buffer_budget_bytes():
    """Bytes allowed per pipelined tile buffer (2 in + 2 out double buffers).

    4 MiB/buffer on v7x (64 MiB physical VMEM), 6 MiB/buffer on 128 MiB parts
    (v5e/v6e); either way 4 buffers + compiler scratch stay well under the
    explicit 32 MiB vmem limit requested below.
    """
    try:
        vmem = int(pltpu.get_tpu_info().vmem_capacity_bytes)
    except Exception:
        vmem = 64 * 1024 * 1024          # conservative default (v7x-sized)
    return 6 * 1024 * 1024 if vmem >= 128 * 1024 * 1024 else 4 * 1024 * 1024


def _flatten_lane_dense(x):
    """Flatten x to (rows, cols) with cols a large multiple of 128 when possible."""
    if x.ndim == 0:
        return x.reshape(1, 1)
    total = int(x.size)
    pack = _sublane_pack(x.dtype)
    if total % _LANE == 0:
        cols = _LANE
        min_rows = 2 * pack              # leave >= 2 sublane-pack row tiles
        while (cols * 2 <= _MAX_COLS
               and total % (cols * 2) == 0
               and total // (cols * 2) >= min_rows):
            cols *= 2
        return x.reshape(total // cols, cols)
    # Fallback (rare): element count not divisible by 128.  Keep a simple 2D
    # view; the tiler still bounds per-block bytes via row/column tiling.
    lead = 1
    for d in x.shape[:-1]:
        lead *= int(d)
    return x.reshape(lead, int(x.shape[-1]))


def _pick_tiles(rows, cols, dtype):
    """Row/column tile sizes bounded by the per-buffer VMEM budget."""
    itemsize = jnp.dtype(dtype).itemsize
    pack = _sublane_pack(dtype)
    per_buffer = _per_buffer_budget_bytes()

    # Column tile: full cols when small, else a multiple of 128 whose single
    # packed-row strip fits the budget.
    if cols <= _LANE:
        tc = cols
    else:
        tc = min(cols, _MAX_COLS)
        tc = max(_LANE, (tc // _LANE) * _LANE)
        while pack * tc * itemsize > per_buffer and tc > _LANE:
            tc = max(_LANE, (tc // 2 // _LANE) * _LANE)

    # Row tile: multiple of the packed sublane count, as many as fit the budget.
    if rows <= pack:
        tr = rows
    else:
        fit_rows = per_buffer // max(1, tc * itemsize)
        tr = max(pack, (min(rows, fit_rows) // pack) * pack)
        tr = min(tr, 4096)
        # Guarantee >=2 (ideally >=4) row-tile programs so both v7x TensorCores
        # get work and the input/output pipeline actually overlaps.
        min_tiles = 4 if rows >= 4 * pack else (2 if rows >= 2 * pack else 1)
        if min_tiles > 1:
            tr = min(tr, max(pack, ((rows // min_tiles) // pack) * pack))
    return tr, tc


def _apply_forward(x):
    """Apply `_forward_compute` elementwise via a lane-dense tiled Pallas kernel."""
    orig_shape = x.shape
    x2d = _flatten_lane_dense(x)
    rows, cols = int(x2d.shape[0]), int(x2d.shape[1])
    tr, tc = _pick_tiles(rows, cols, x2d.dtype)
    grid = (pl.cdiv(rows, tr), pl.cdiv(cols, tc))
    out2d = pl.pallas_call(
        _noise_kernel,
        out_shape=jax.ShapeDtypeStruct((rows, cols), x2d.dtype),
        grid=grid,
        in_specs=[pl.BlockSpec((tr, tc), lambda i, j: (i, j))],
        out_specs=pl.BlockSpec((tr, tc), lambda i, j: (i, j)),
        compiler_params=pltpu.CompilerParams(
            dimension_semantics=("parallel", "parallel"),
            vmem_limit_bytes=32 * 1024 * 1024,
        ),
    )(x2d)
    return out2d.reshape(orig_shape)


@functools.partial(jax.jit, static_argnames=("p",))
def noise_forward(x, key, p: float = 1.0):
    """Noise.forward: apply `_forward` with probability p, else return x.

    Args:
      x:   array (NCHW in the reference module, any shape works).
      key: jax.random key for the single Bernoulli gate draw.
      p:   probability that `_forward` is applied (default 1.0, as in PyTorch).
    """
    # Static fast path: the base-class `_forward` is the identity, so both
    # gate outcomes return x -- launch no kernel, move zero HBM bytes.
    if _forward_compute is _identity:
        return x

    if p >= 1.0:                       # static fast path: gate is always 1
        return _apply_forward(x)
    if p <= 0.0:                       # static fast path: gate is always 0
        return x
    gate = jax.random.bernoulli(key, p)          # one scalar draw per forward
    return lax.cond(gate, _apply_forward, lambda v: v, x)


if __name__ == "__main__":
    key = jax.random.PRNGKey(0)
    kx, kgate = jax.random.split(key)
    x = jax.random.normal(kx, (2, 4, 16, 16), dtype=jnp.float32)

    # Kernel smoke test: run the Pallas `_forward` pass directly (the identity
    # fast path in noise_forward intentionally skips the launch entirely).
    y = jax.block_until_ready(_apply_forward(x))
    assert y.shape == x.shape and y.dtype == x.dtype
    assert bool(jnp.array_equal(y, x)), "Pallas _forward (identity) must equal x"

    # Module semantics (base-class _forward is identity -> no kernel launch).
    out1 = jax.block_until_ready(noise_forward(x, kgate, p=1.0))
    assert bool(jnp.array_equal(out1, x)), "p=1.0 path must equal _forward(x)=x"

    out0 = jax.block_until_ready(noise_forward(x, kgate, p=0.0))
    assert bool(jnp.array_equal(out0, x)), "p=0.0 path must return x unchanged"

    outp = jax.block_until_ready(noise_forward(x, kgate, p=0.5))
    assert bool(jnp.array_equal(outp, x)), "gated path must reproduce x"

    print("KERNEL_OK")
</pallas_src>

<mosaic_0001>
module attributes {stable_mosaic.version = 11 : i64} {
  func.func @_noise_kernel(%arg0: i32, %arg1: i32, %arg2: memref<8x128xf32, #tpu.memory_space<vmem>>, %arg3: memref<8x128xf32, #tpu.memory_space<vmem>>) attributes {dimension_semantics = [#tpu.dimension_semantics<parallel>, #tpu.dimension_semantics<parallel>], iteration_bounds = array<i64: 2, 1>, scalar_prefetch = 0 : i64, scratch_operands = 0 : i64, tpu.core_type = #tpu.core_type<tc>, window_params = [{transform_indices = @transform_0, window_bounds = array<i64: 8, 128>}, {transform_indices = @transform_1, window_bounds = array<i64: 8, 128>}]} {
    %c0 = arith.constant 0 : index
    %c0_0 = arith.constant 0 : index
    %0 = vector.load %arg2[%c0, %c0_0] : memref<8x128xf32, #tpu.memory_space<vmem>>, vector<8x128xf32>
    %c0_1 = arith.constant 0 : index
    %c0_2 = arith.constant 0 : index
    %1 = vector.load %arg3[%c0_1, %c0_2] : memref<8x128xf32, #tpu.memory_space<vmem>>, vector<8x128xf32>
    tpu.vector_store %arg3[%c0_1, %c0_2], %0 {strides = array<i32>} : memref<8x128xf32, #tpu.memory_space<vmem>>, vector<8x128xf32>,
    return
  }
  func.func @transform_0(%arg0: i32, %arg1: i32) -> (i32, i32) {
    %c0_i32 = arith.constant 0 : i32
    return %arg0, %arg1 : i32, i32
  }
  func.func @transform_1(%arg0: i32, %arg1: i32) -> (i32, i32) {
    %c0_i32 = arith.constant 0 : i32
    return %arg0, %arg1 : i32, i32
  }
}

</mosaic_0001>

<llo_original>
// kernel: tpu_custom_call.1
$region0: #{tpu_custom_call.1}
  #allocation0 [shape = 'u32[]', space=smem, size = 0x4, offset = 0x4, fixed_abs, tag = 'smem constant byte address 0x4 - core index']
  #allocation1 [shape = 'u32[144,128]{1,0:T(1,128)}', space=vmem, size = 0x12000, scoped, tag = 'internal scratch']
  %s0 = inlined_call_operand.hbm [shape: f32[16,128], index: 0, kind: input, shape index: {}]
  %s1 = inlined_call_operand.hbm [shape: f32[16,128], index: 1, kind: output, shape index: {}]
  %s2 = sld [smem:[#allocation0]]
  $region41: #{tpu_custom_call.1} parent=0
    _
  %s4 = ssub.s32 1, %s2
  %s5 = scalar_select 0, %s4, %s2
  $region1: #{tpu_custom_call.1} parent=0
    #allocation2 [shape = 'u8[8192]{0}', space=vmem, size = 0x2000, scoped, tag = 'input window, operand 0']
    #allocation3 [shape = 's32[2]{0}', space=sflag, size = 0x8, scoped, tag = 'scoped memory for tpu_custom_call.1']
    #allocation4 [shape = 's32[2]{0}', space=sflag, size = 0x8, scoped, tag = 'scoped memory for tpu_custom_call.1']
    #allocation5 [shape = 'u8[8192]{0}', space=vmem, size = 0x2000, scoped, tag = 'output window, operand 0']
    %6 = vsyncpa [#allocation3], 0
    %s7 = scalar_lea.sflag [#allocation3], 1
    %8 = vsyncpa %s7, 0
    %9 = vsyncpa [#allocation4], 0
    %s10 = scalar_lea.sflag [#allocation4], 1
    %11 = vsyncpa %s10, 0
    loop: start=0, step=1, limit=4
    $region2: #{tpu_custom_call.1} parent=1 // loop_pre_header
      _
    $region3: #{tpu_custom_call.1} parent=1 // loop_header
      %s13 = sphi 0, %s17
      %p14 = scmp.ge.s32.totalorder %s13, 4
      %s20 = sphi 0, %s32
      %s21 = sphi 0, %s28
      %s22 = sphi 0, %s20
      %s23 = sphi 0, %s21
      %s24 = sphi 0, %s22
      %s25 = sphi 0, %s23
      %s37 = sphi 0, %s39
      %s40 = sphi 0, %s37
      %s41 = sphi 0, %s40
      %s57 = sphi 0, %s41
      %s65 = sphi 0, %s67
      %s68 = sphi 0, %s65
      %s69 = sphi 0, %s68
      %s85 = sphi 0, %s69
    $region4: #{tpu_custom_call.1} parent=1 // loop_header_branch
      %16 = sbr.rel (%p14) target = $region8
    $region5: #{tpu_custom_call.1} parent=1 // loop_body
      %s18 = ssub.s32 %s13, 1
      %s19 = ssub.s32 %s13, 2
      %s26 = sadd.s32 1, %s21
      %p27 = scmp.ge.s32.totalorder %s26, 1
      %s28 = scalar_select %p27, 0, %s26
      %s29 = sadd.s32 1, %s20
      %s30 = scalar_select %p27, %s29, %s20
      %p31 = scmp.ge.s32.totalorder %s30, 2
      %s32 = scalar_select %p31, 0, %s30
      %s33 = ssub.s32 %s20, %s32
      %s34 = ssub.s32 %s21, %s28
      %s35 = sor.u32 %s33, %s34
      %p36 = scmp.eq.s32.totalorder %s35, 0
      %s38 = sadd.s32 %s37, 1
      %s39 = scalar_select %p36, %s37, %s38
      %p42 = pneg %p36
      %p43 = scmp.eq.s32.totalorder %s13, 1
      %p44 = por %p42, %p43
      %p45 = scmp.ne.s32.totalorder %s37, %s40
      %p46 = scmp.eq.s32.totalorder %s13, 0
      %p47 = por %p45, %p46
      %p48 = scmp.ne.s32.totalorder %s37, %s40
      %p49 = scmp.eq.s32.totalorder %s18, 1
      %p50 = por %p48, %p49
      %p51 = scmp.ne.s32.totalorder %s40, %s41
      %p52 = scmp.eq.s32.totalorder %s18, 0
      %p53 = por %p51, %p52
      %p54 = scmp.ne.s32.totalorder %s40, %s41
      %p55 = scmp.eq.s32.totalorder %s19, 1
      %p56 = por %p54, %p55
      %p58 = scmp.ne.s32.totalorder %s41, %s57
      %p59 = scmp.eq.s32.totalorder %s19, 0
      %p60 = por %p58, %p59
      %s61 = ssub.s32 %s20, %s32
      %s62 = ssub.s32 %s21, %s28
      %s63 = sor.u32 %s61, %s62
      %p64 = scmp.eq.s32.totalorder %s63, 0
      %s66 = sadd.s32 %s65, 1
      %s67 = scalar_select %p64, %s65, %s66
      %p70 = pneg %p64
      %p71 = scmp.eq.s32.totalorder %s13, 1
      %p72 = por %p70, %p71
      %p73 = scmp.ne.s32.totalorder %s65, %s68
      %p74 = scmp.eq.s32.totalorder %s13, 0
      %p75 = por %p73, %p74
      %p76 = scmp.ne.s32.totalorder %s65, %s68
      %p77 = scmp.eq.s32.totalorder %s18, 1
      %p78 = por %p76, %p77
      %p79 = scmp.ne.s32.totalorder %s68, %s69
      %p80 = scmp.eq.s32.totalorder %s18, 0
      %p81 = por %p79, %p80
      %p82 = scmp.ne.s32.totalorder %s68, %s69
      %p83 = scmp.eq.s32.totalorder %s19, 1
      %p84 = por %p82, %p83
      %p86 = scmp.ne.s32.totalorder %s69, %s85
      %p87 = scmp.eq.s32.totalorder %s19, 0
      %p88 = por %p86, %p87
      %p89 = scmp.le.s32.totalorder 1, %s13
      %p90 = scmp.lt.s32.totalorder %s13, 3
      %p91 = pnand %p89, %p90
      %p92 = pneg %p91
      // Predicated region
      $region9: #{tpu_custom_call.1} parent=5 // pred_check
        _
      $region10: #{tpu_custom_call.1} parent=5 // pred_check_branch
        %94 = sbr.rel (%p91) target = $region12
      $region11: #{tpu_custom_call.1} parent=5 // pred_region
        %s95 = ssub.s32 %s13, 1
      $region12: #{tpu_custom_call.1} parent=5 // pred_fallthru
        _
      %p96 = scmp.lt.s32.totalorder %s13, 2
      // Predicated region
      $region13: #{tpu_custom_call.1} parent=5 // pred_check
        %p97 = pneg %p96
      $region14: #{tpu_custom_call.1} parent=5 // pred_check_branch
        %99 = sbr.rel (%p97) target = $region16
      $region15: #{tpu_custom_call.1} parent=5 // pred_region
        // Predicated region
        $region17: #{tpu_custom_call.1} parent=15 // pred_check
          %p100 = pneg %p47
        $region18: #{tpu_custom_call.1} parent=15 // pred_check_branch
          %102 = sbr.rel (%p100) target = $region20
        $region19: #{tpu_custom_call.1} parent=15 // pred_region
          %s103 = sand.u32 %s37, 1
          %s104 = scalar_lea.sflag [#allocation3], %s103
          %s105 = sand.u32 %s37, 1
          %s106 = smul.addr %s105, 8
          %s107 = scalar_lea.vmem [#allocation2], %s106
          %s109 = ssub.s32 128, 128
          %110 = vsyncadd %s104, %s109
          %s111 = sadd.s32 %s21, %s20
          %s112 = smul.addr %s111, 128
          %s113 = scalar_lea.hbm %s0, %s112
          %s115 = sshll.u32 %s107, 4
          %s116 = int_to_ptr.vmem [resolvable:$true] %s115
          %118 = dma.hbm_to_vmem [thread:$0]  %s113, 128, %s116, %s104
        $region20: #{tpu_custom_call.1} parent=15 // pred_fallthru
          _
      $region16: #{tpu_custom_call.1} parent=5 // pred_fallthru
        _
      %p119 = scmp.le.s32.totalorder 1, %s13
      %p120 = scmp.lt.s32.totalorder %s13, 3
      %p121 = pnand %p119, %p120
      %p122 = pneg %p121
      // Predicated region
      $region21: #{tpu_custom_call.1} parent=5 // pred_check
        _
      $region22: #{tpu_custom_call.1} parent=5 // pred_check_branch
        %124 = sbr.rel (%p121) target = $region24
      $region23: #{tpu_custom_call.1} parent=5 // pred_region
        %s125 = ssub.s32 %s13, 1
        %s126 = sand.u32 %s40, 1
        %s127 = scalar_lea.sflag [#allocation3], %s126
        %s128 = sand.u32 %s40, 1
        %s129 = smul.addr %s128, 8
        %s130 = scalar_lea.vmem [#allocation2], %s129
        // Predicated region
        $region25: #{tpu_custom_call.1} parent=23 // pred_check
          %p131 = pneg %p53
        $region26: #{tpu_custom_call.1} parent=23 // pred_check_branch
          %133 = sbr.rel (%p131) target = $region28
        $region27: #{tpu_custom_call.1} parent=23 // pred_region
          %134 = dma.done %s127, 128
        $region28: #{tpu_custom_call.1} parent=23 // pred_fallthru
          _
        %s135 = sand.u32 %s40, 1
        %s136 = scalar_lea.sflag [#allocation3], %s135
        %s137 = sand.u32 %s40, 1
        %s138 = smul.addr %s137, 8
        %s139 = scalar_lea.vmem [#allocation2], %s138
        %p140 = pneg %p53
        %p141 = pneg %p50
        %p142 = pneg %p81
        %p143 = pneg %p78
        %s144 = sand.u32 %s68, 1
        %s145 = scalar_lea.sflag [#allocation4], %s144
        %s146 = sand.u32 %s68, 1
        %s147 = smul.addr %s146, 8
        %s148 = scalar_lea.vmem [#allocation5], %s147
        %v149 = vld [vmem:[%s130] sm:$0xff]
        %150 = vst [vmem:[%s148] sm:$0xff] %v149
        %s151 = sand.u32 %s68, 1
        %s152 = scalar_lea.sflag [#allocation4], %s151
        %s153 = sand.u32 %s68, 1
        %s154 = smul.addr %s153, 8
        %s155 = scalar_lea.vmem [#allocation5], %s154
        // Predicated region
        $region29: #{tpu_custom_call.1} parent=23 // pred_check
          %p156 = pneg %p78
        $region30: #{tpu_custom_call.1} parent=23 // pred_check_branch
          %158 = sbr.rel (%p156) target = $region32
        $region31: #{tpu_custom_call.1} parent=23 // pred_region
          %s160 = ssub.s32 128, 128
          %161 = vsyncadd %s152, %s160
          %s162 = sadd.s32 %s23, %s22
          %s163 = smul.addr %s162, 128
          %s164 = scalar_lea.hbm %s1, %s163
          %s166 = sshll.u32 %s155, 4
          %s167 = int_to_ptr.vmem [resolvable:$true] %s166
          %169 = dma.vmem_to_hbm [thread:$0]  %s167, 128, %s164, %s152
        $region32: #{tpu_custom_call.1} parent=23 // pred_fallthru
          _
      $region24: #{tpu_custom_call.1} parent=5 // pred_fallthru
        _
      %p170 = scmp.le.s32.totalorder 2, %s13
      // Predicated region
      $region33: #{tpu_custom_call.1} parent=5 // pred_check
        %p171 = pneg %p170
      $region34: #{tpu_custom_call.1} parent=5 // pred_check_branch
        %173 = sbr.rel (%p171) target = $region36
      $region35: #{tpu_custom_call.1} parent=5 // pred_region
        %s174 = ssub.s32 %s13, 2
        // Predicated region
        $region37: #{tpu_custom_call.1} parent=35 // pred_check
          %p175 = pneg %p84
        $region38: #{tpu_custom_call.1} parent=35 // pred_check_branch
          %177 = sbr.rel (%p175) target = $region40
        $region39: #{tpu_custom_call.1} parent=35 // pred_region
          %s178 = sand.u32 %s69, 1
          %s179 = scalar_lea.sflag [#allocation4], %s178
          %s180 = sand.u32 %s69, 1
          %s181 = smul.addr %s180, 8
          %s182 = scalar_lea.vmem [#allocation5], %s181
          %183 = dma.done %s179, 128
        $region40: #{tpu_custom_call.1} parent=35 // pred_fallthru
          _
      $region36: #{tpu_custom_call.1} parent=5 // pred_fallthru
        _
    $region6: #{tpu_custom_call.1} parent=1 // loop_footer
      %s17 = sadd.s32 1, %s13
    $region7: #{tpu_custom_call.1} parent=1 // loop_footer_branch
      %12 = sbr.rel target = $region3
    $region8: #{tpu_custom_call.1} parent=1 // loop_exit
      _
    %184 = vsyncpa [#allocation3], 1
    %s185 = scalar_lea.sflag [#allocation3], 1
    %186 = vsyncpa %s185, 1
    %187 = vsyncpa [#allocation4], 1
    %s188 = scalar_lea.sflag [#allocation4], 1
    %189 = vsyncpa %s188, 1

</llo_original>
